<compile_context>
chip_gen: v7x
topology: tpu7x:2x2x1
jax: 0.10.0
libtpu: 0.0.40
codegen_flags: <defaults>
</compile_context>

<pallas_src>
import jax
import jax.numpy as jnp
from jax import lax
from jax.experimental import pallas as pl
from jax.experimental.pallas import tpu as pltpu


def _lgq_kernel(w_ref, taps_ref, b_ref, o_ref):
    """out[Cout, TILE_N] = W_big @ taps_tile + b_big.

    All of {depthwise 3x3 conv, AvgPool branch, 1x1 projection, conv biases,
    BatchNorm affine} are folded into (w_ref, b_ref) on the host, so the kernel
    is a single MXU matmul (bf16 inputs, f32 accumulation) plus one f32 bias add.
    """
    acc = jnp.dot(w_ref[...], taps_ref[...], preferred_element_type=jnp.float32)
    o_ref[...] = (acc + b_ref[...]).astype(o_ref.dtype)


def local_global_query(x_nchw, params, *, tile_n=None, compute_dtype=jnp.bfloat16):
    B, Cin, H, W = x_nchw.shape
    Ho = (H + 2 - 3) // 2 + 1
    Wo = (W + 2 - 3) // 2 + 1
    Cout = params["w_proj"].shape[0]
    N = B * Ho * Wo

    # ---- host-side parameter folding (no activation compute) -----------------
    # W_big[k*Cin + c, co] = (w_local[c, k] + [k == 4]) * w_proj[co, c] * bn_scale[co]
    # b_big[co] = bn_scale[co] * ((b_local @ w_proj.T)[co] + b_proj[co] - bn_mean[co])
    #             + bn_beta[co]
    w_local = params["w_local"].reshape(Cin, 9)            # [c, kh*3+kw]
    w_eff = w_local.T                                      # [9, Cin]
    w_eff = w_eff.at[4].add(1.0)                           # fold AvgPool2d(1,2,0): center tap
    w_proj = params["w_proj"].reshape(Cout, Cin)           # [co, c]
    bn_scale = params["bn_gamma"] / jnp.sqrt(params["bn_var"] + 1e-5)
    w_big = w_eff[:, :, None] * w_proj.T[None, :, :] * bn_scale[None, None, :]
    w_big = w_big.reshape(9 * Cin, Cout).T.astype(compute_dtype)   # [Cout, 9*Cin]
    b_big = bn_scale * (params["b_local"] @ w_proj.T + params["b_proj"]
                        - params["bn_mean"]) + params["bn_beta"]
    b_big = b_big.reshape(Cout, 1).astype(jnp.float32)

    # ---- host-side im2col: gather the 9 stride-2 taps, channel-major ---------
    # Layout [9*Cin, N] (N on lanes): written once by XLA, read once (lane-dense)
    # by the kernel in bf16.  All MACs happen in the Pallas kernel.
    # TODO(synk): for very large inputs, a halo-DMA scheme (memory_space=pl.ANY +
    # manual make_async_copy of strided input rows) would avoid materializing the
    # 9x-duplicated taps tensor in HBM entirely.
    xp = jnp.pad(x_nchw, ((0, 0), (0, 0), (1, 1), (1, 1)))
    taps = jnp.stack(
        [xp[:, :, kh:kh + 2 * Ho:2, kw:kw + 2 * Wo:2]
         for kh in range(3) for kw in range(3)], axis=0)   # [9, B, Cin, Ho, Wo]
    taps = jnp.transpose(taps, (0, 2, 1, 3, 4))            # [9, Cin, B, Ho, Wo]
    taps = taps.reshape(9 * Cin, N).astype(compute_dtype)  # [9*Cin, N]

    # ---- tiling ---------------------------------------------------------------
    if tile_n is None:
        # Big tiles amortize per-grid-step overhead; keep >= 2 grid steps so both
        # v7x TensorCores get work.  Tiny inputs fall back to the 128-lane minimum.
        tile_n = 512 if N >= 2 * 512 else 128
    n_pad = (-N) % tile_n
    if n_pad:
        taps = jnp.pad(taps, ((0, 0), (0, n_pad)))
    Np = N + n_pad
    grid = (Np // tile_n,)

    out_t = pl.pallas_call(
        _lgq_kernel,
        out_shape=jax.ShapeDtypeStruct((Cout, Np), jnp.float32),
        grid_spec=pltpu.PrefetchScalarGridSpec(
            num_scalar_prefetch=0,
            grid=grid,
            in_specs=[
                pl.BlockSpec((Cout, 9 * Cin), lambda i: (0, 0)),    # W_big (resident)
                pl.BlockSpec((9 * Cin, tile_n), lambda i: (0, i)),  # taps tile
                pl.BlockSpec((Cout, 1), lambda i: (0, 0)),          # b_big (resident)
            ],
            out_specs=pl.BlockSpec((Cout, tile_n), lambda i: (0, i)),
        ),
        compiler_params=pltpu.CompilerParams(
            dimension_semantics=("parallel",),
            vmem_limit_bytes=32 * 1024 * 1024,
        ),
    )(w_big, taps, b_big)

    out = out_t[:, :N].reshape(Cout, B, Ho, Wo)
    return jnp.transpose(out, (1, 0, 2, 3))  # back to NCHW


def init_params(key, in_dim, out_dim):
    ks = jax.random.split(key, 8)
    return {
        # nn.Conv2d(in_dim, in_dim, 3, stride=2, padding=1, groups=in_dim)
        "w_local": 0.1 * jax.random.normal(ks[0], (in_dim, 1, 3, 3), jnp.float32),
        "b_local": 0.1 * jax.random.normal(ks[1], (in_dim,), jnp.float32),
        # ConvNorm: Conv2d(in_dim, out_dim, 1, bias=True) + BatchNorm2d(out_dim)
        "w_proj": 0.1 * jax.random.normal(ks[2], (out_dim, in_dim, 1, 1), jnp.float32),
        "b_proj": 0.1 * jax.random.normal(ks[3], (out_dim,), jnp.float32),
        "bn_gamma": 1.0 + 0.1 * jax.random.normal(ks[4], (out_dim,), jnp.float32),
        "bn_beta": 0.1 * jax.random.normal(ks[5], (out_dim,), jnp.float32),
        "bn_mean": 0.1 * jax.random.normal(ks[6], (out_dim,), jnp.float32),
        "bn_var": jax.random.uniform(ks[7], (out_dim,), jnp.float32, 0.5, 1.5),
    }


def reference(x_nchw, params):
    """Pure-JAX f32 reference matching the PyTorch forward (eval-mode BN)."""
    Cin = x_nchw.shape[1]
    dn = ("NCHW", "OIHW", "NCHW")
    local_q = lax.conv_general_dilated(
        x_nchw, params["w_local"], (2, 2), ((1, 1), (1, 1)),
        feature_group_count=Cin, dimension_numbers=dn)
    local_q = local_q + params["b_local"][None, :, None, None]
    pool_q = x_nchw[:, :, ::2, ::2]                      # AvgPool2d(1, 2, 0)
    q = local_q + pool_q
    y = lax.conv_general_dilated(q, params["w_proj"], (1, 1), ((0, 0), (0, 0)),
                                 dimension_numbers=dn)
    y = y + params["b_proj"][None, :, None, None]
    g = params["bn_gamma"] / jnp.sqrt(params["bn_var"] + 1e-5)
    y = (y - params["bn_mean"][None, :, None, None]) * g[None, :, None, None] \
        + params["bn_beta"][None, :, None, None]
    return y


if __name__ == "__main__":
    B, Cin, H, W = 2, 16, 16, 16
    Cout = 32

    key = jax.random.PRNGKey(0)
    kx, kp = jax.random.split(key)
    x = jax.random.normal(kx, (B, Cin, H, W), jnp.float32)
    params = init_params(kp, Cin, Cout)

    out = jax.block_until_ready(local_global_query(x, params))
    ref = jax.block_until_ready(reference(x, params))

    assert out.shape == ref.shape == (B, Cout, H // 2, W // 2), (out.shape, ref.shape)
    # bf16 activations/weights (with f32 MXU accumulation) give ~1e-3-level absolute
    # deviations vs the pure-f32 reference; any structural bug would be O(0.1-1).
    max_err = float(jnp.max(jnp.abs(out - ref)))
    assert jnp.allclose(out, ref, atol=3e-2, rtol=3e-2), max_err

    print("KERNEL_OK")
</pallas_src>

<mosaic_0001>
module attributes {stable_mosaic.version = 11 : i64} {
  func.func @_lgq_kernel(%arg0: i32, %arg1: memref<32x144xbf16, #tpu.memory_space<vmem>>, %arg2: memref<144x128xbf16, #tpu.memory_space<vmem>>, %arg3: memref<32x1xf32, #tpu.memory_space<vmem>>, %arg4: memref<32x128xf32, #tpu.memory_space<vmem>>) attributes {dimension_semantics = [#tpu.dimension_semantics<parallel>], iteration_bounds = array<i64: 1>, scalar_prefetch = 0 : i64, scratch_operands = 0 : i64, tpu.core_type = #tpu.core_type<tc>, window_params = [{pipeline_mode = #tpu.pipeline_mode<synchronous>, transform_indices = @transform_0, window_bounds = array<i64: 32, 144>}, {transform_indices = @transform_1, window_bounds = array<i64: 144, 128>}, {pipeline_mode = #tpu.pipeline_mode<synchronous>, transform_indices = @transform_2, window_bounds = array<i64: 32, 1>}, {transform_indices = @transform_3, window_bounds = array<i64: 32, 128>}]} {
    %c0 = arith.constant 0 : index
    %c0_0 = arith.constant 0 : index
    %0 = vector.load %arg1[%c0, %c0_0] : memref<32x144xbf16, #tpu.memory_space<vmem>>, vector<32x144xbf16>
    %c0_1 = arith.constant 0 : index
    %c0_2 = arith.constant 0 : index
    %1 = vector.load %arg2[%c0_1, %c0_2] : memref<144x128xbf16, #tpu.memory_space<vmem>>, vector<144x128xbf16>
    %cst = arith.constant dense<0.000000e+00> : vector<32x128xf32>
    %2 = tpu.matmul %0, %1, %cst {dimension_numbers = #tpu.dot_dimension_numbers<[1], [0], [0], [1], [0, 0, 1, 1], [], []>} : vector<32x144xbf16>, vector<144x128xbf16>, vector<32x128xf32> -> vector<32x128xf32>
    %c0_3 = arith.constant 0 : index
    %c0_4 = arith.constant 0 : index
    %3 = vector.load %arg3[%c0_3, %c0_4] : memref<32x1xf32, #tpu.memory_space<vmem>>, vector<32x1xf32>
    %4 = vector.broadcast %3 : vector<32x1xf32> to vector<32x128xf32>
    %5 = arith.addf %2, %4 : vector<32x128xf32>
    %c0_5 = arith.constant 0 : index
    %c0_6 = arith.constant 0 : index
    %6 = vector.load %arg4[%c0_5, %c0_6] : memref<32x128xf32, #tpu.memory_space<vmem>>, vector<32x128xf32>
    tpu.vector_store %arg4[%c0_5, %c0_6], %5 {strides = array<i32>} : memref<32x128xf32, #tpu.memory_space<vmem>>, vector<32x128xf32>,
    return
  }
  func.func @transform_0(%arg0: i32) -> (i32, i32) {
    %c0_i32 = arith.constant 0 : i32
    %c0_i32_0 = arith.constant 0 : i32
    %c0_i32_1 = arith.constant 0 : i32
    return %c0_i32, %c0_i32_0 : i32, i32
  }
  func.func @transform_1(%arg0: i32) -> (i32, i32) {
    %c0_i32 = arith.constant 0 : i32
    %c0_i32_0 = arith.constant 0 : i32
    return %c0_i32, %arg0 : i32, i32
  }
  func.func @transform_2(%arg0: i32) -> (i32, i32) {
    %c0_i32 = arith.constant 0 : i32
    %c0_i32_0 = arith.constant 0 : i32
    %c0_i32_1 = arith.constant 0 : i32
    return %c0_i32, %c0_i32_0 : i32, i32
  }
  func.func @transform_3(%arg0: i32) -> (i32, i32) {
    %c0_i32 = arith.constant 0 : i32
    %c0_i32_0 = arith.constant 0 : i32
    return %c0_i32, %arg0 : i32, i32
  }
}

</mosaic_0001>

<llo_original>
// kernel: tpu_custom_call.1
$region0: #{tpu_custom_call.1}
  #allocation0 [shape = 'u32[]', space=smem, size = 0x4, offset = 0x4, fixed_abs, tag = 'smem constant byte address 0x4 - core index']
  #allocation1 [shape = 'u32[144,128]{1,0:T(1,128)}', space=vmem, size = 0x12000, scoped, tag = 'internal scratch']
  %s0 = inlined_call_operand.vmem [shape: bf16[32,144], index: 0, kind: input, shape index: {}]
  %s1 = inlined_call_operand.hbm [shape: bf16[144,128], index: 1, kind: input, shape index: {}]
  %s2 = inlined_call_operand.vmem [shape: f32[32,1], index: 2, kind: input, shape index: {}]
  %s3 = inlined_call_operand.hbm [shape: f32[32,128], index: 3, kind: output, shape index: {}]
  %s4 = sld [smem:[#allocation0]]
  $region26: #{tpu_custom_call.1} parent=0
    _
  %s6 = ssub.s32 1, %s4
  %s7 = scalar_select 0, %s6, %s4
  $region1: #{tpu_custom_call.1} parent=0
    #allocation2 [shape = 'u8[36864]{0}', space=vmem, size = 0x9000, scoped, tag = 'input window, operand 1, single buffered']
    #allocation3 [shape = 's32[1]{0}', space=sflag, size = 0x4, scoped, tag = 'scoped memory for tpu_custom_call.1']
    #allocation4 [shape = 's32[1]{0}', space=sflag, size = 0x4, scoped, tag = 'scoped memory for tpu_custom_call.1']
    #allocation5 [shape = 'u8[16384]{0}', space=vmem, size = 0x4000, scoped, tag = 'output window, operand 0, single buffered']
    %8 = vsyncpa [#allocation3], 0
    %9 = vsyncpa [#allocation4], 0
    // Predicated region
    $region2: #{tpu_custom_call.1} parent=1 // pred_check
      _
    $region3: #{tpu_custom_call.1} parent=1 // pred_check_branch
      %11 = sbr.rel (0) target = $region5
    $region4: #{tpu_custom_call.1} parent=1 // pred_region
      _
    $region5: #{tpu_custom_call.1} parent=1 // pred_fallthru
      _
    // Predicated region
    $region6: #{tpu_custom_call.1} parent=1 // pred_check
      _
    $region7: #{tpu_custom_call.1} parent=1 // pred_check_branch
      %13 = sbr.rel (0) target = $region9
    $region8: #{tpu_custom_call.1} parent=1 // pred_region
      %s15 = ssub.s32 1152, 1152
      %16 = vsyncadd [#allocation3], %s15
      %s17 = sshll.u32 [#allocation2], 4
      %s18 = int_to_ptr.vmem [resolvable:$true] %s17
      %23 = dma.hbm_to_vmem [thread:$0]  %s1, 1152, %s18, [#allocation3], 64, 64, 4
    $region9: #{tpu_custom_call.1} parent=1 // pred_fallthru
      _
    // Predicated region
    $region10: #{tpu_custom_call.1} parent=1 // pred_check
      _
    $region11: #{tpu_custom_call.1} parent=1 // pred_check_branch
      %25 = sbr.rel (0) target = $region13
    $region12: #{tpu_custom_call.1} parent=1 // pred_region
      _
    $region13: #{tpu_custom_call.1} parent=1 // pred_fallthru
      _
    // Predicated region
    $region14: #{tpu_custom_call.1} parent=1 // pred_check
      _
    $region15: #{tpu_custom_call.1} parent=1 // pred_check_branch
      %27 = sbr.rel (0) target = $region17
    $region16: #{tpu_custom_call.1} parent=1 // pred_region
      %28 = dma.done [#allocation3], 1152
    $region17: #{tpu_custom_call.1} parent=1 // pred_fallthru
      _
    %v30 = vld [vmem:[%s0] sm:$0xff]
    %v31 = vld [vmem:[%s0 + $0x8] sm:$0xff]
    %v32 = vld [vmem:[%s0 + $0x10] sm:$0xff]
    %v33 = vld [vmem:[%s0 + $0x18] sm:$0xff]
    %v34 = vld [vmem:[#allocation2] sm:$0xf]
    %v35 = vld [vmem:[#allocation2 + $0x4] sm:$0xf]
    %v36 = vld [vmem:[#allocation2 + $0x8] sm:$0xf]
    %v37 = vld [vmem:[#allocation2 + $0xc] sm:$0xf]
    %v38 = vld [vmem:[#allocation2 + $0x10] sm:$0xf]
    %v39 = vld [vmem:[#allocation2 + $0x14] sm:$0xf]
    %v40 = vld [vmem:[#allocation2 + $0x18] sm:$0xf]
    %v41 = vld [vmem:[#allocation2 + $0x1c] sm:$0xf]
    %v42 = vld [vmem:[#allocation2 + $0x20] sm:$0xf]
    %v43 = vld [vmem:[#allocation2 + $0x24] sm:$0xf]
    %v44 = vld [vmem:[#allocation2 + $0x28] sm:$0xf]
    %v45 = vld [vmem:[#allocation2 + $0x2c] sm:$0xf]
    %v46 = vld [vmem:[#allocation2 + $0x30] sm:$0xf]
    %v47 = vld [vmem:[#allocation2 + $0x34] sm:$0xf]
    %v48 = vld [vmem:[#allocation2 + $0x38] sm:$0xf]
    %v49 = vld [vmem:[#allocation2 + $0x3c] sm:$0xf]
    %v50 = vld [vmem:[#allocation2 + $0x40] sm:$0xf]
    %v51 = vld [vmem:[#allocation2 + $0x44] sm:$0xf]
    %v52 = vld [vmem:[%s2] sm:$0xff]
    %v53 = vld [vmem:[%s2 + $0x8] sm:$0xff]
    %v54 = vld [vmem:[%s2 + $0x10] sm:$0xff]
    %v55 = vld [vmem:[%s2 + $0x18] sm:$0xff]
    %57 = vset.pattern.permute.xlu0 0
    %58 = vperm.xlu0 %57, %v52
    %v59 = vpop.permute.xlu0 %58
    %62 = vset.pattern.permute.xlu0 0
    %63 = vperm.xlu0 %62, %v53
    %v64 = vpop.permute.xlu0 %63
    %67 = vset.pattern.permute.xlu0 0
    %68 = vperm.xlu0 %67, %v54
    %v69 = vpop.permute.xlu0 %68
    %72 = vset.pattern.permute.xlu0 0
    %73 = vperm.xlu0 %72, %v55
    %v74 = vpop.permute.xlu0 %73
    %v80 = vunpack.c.l.b16 %v30
    %v81 = vunpack.c.h.b16 %v30
    %v82 = vunpack.c.l.b16 %v31
    %v83 = vunpack.c.h.b16 %v31
    %v84 = vunpack.c.l.b16 %v32
    %v85 = vunpack.c.h.b16 %v32
    %v86 = vunpack.c.l.b16 %v33
    %v87 = vunpack.c.h.b16 %v33
    %v88 = vpack.c.b16 %v82, %v80
    %v89 = vpack.c.b16 %v83, %v81
    %v90 = vpack.c.b16 %v86, %v84
    %v91 = vpack.c.b16 %v87, %v85
    %v112 = vunpack.c.l.b16 %v34
    %v113 = vunpack.c.l.b16 %v35
    %v114 = vunpack.c.l.b16 %v36
    %v115 = vunpack.c.l.b16 %v37
    %v116 = vunpack.c.l.b16 %v38
    %v117 = vunpack.c.l.b16 %v39
    %v118 = vunpack.c.l.b16 %v40
    %v119 = vunpack.c.l.b16 %v41
    %v120 = vunpack.c.l.b16 %v42
    %v121 = vunpack.c.l.b16 %v43
    %v122 = vunpack.c.l.b16 %v44
    %v123 = vunpack.c.l.b16 %v45
    %v124 = vunpack.c.l.b16 %v46
    %v125 = vunpack.c.l.b16 %v47
    %v126 = vunpack.c.l.b16 %v48
    %v127 = vunpack.c.l.b16 %v49
    %v128 = vunpack.c.l.b16 %v50
    %v129 = vunpack.c.l.b16 %v51
    %v130 = vpack.c.b16 %v113, %v112
    %v131 = vpack.c.b16 %v115, %v114
    %v132 = vpack.c.b16 %v117, %v116
    %v133 = vpack.c.b16 %v119, %v118
    %v134 = vpack.c.b16 %v121, %v120
    %v135 = vpack.c.b16 %v123, %v122
    %v136 = vpack.c.b16 %v125, %v124
    %v137 = vpack.c.b16 %v127, %v126
    %v138 = vpack.c.b16 %v129, %v128
    %vm148 = vcmask 130048
    %v150 = vsel %vm148, %v89, 0
    %v153 = vsel %vm148, %v91, 0
    %155 = vmatprep.subr.bf16.mxu0 0
    %156 = vmatpush1.bf16.msra.mxu0 %v130
    %157 = vmatprep.subr.bf16.mxu0 0
    %158 = vmatpush1.bf16.msra.mxu0 %v131
    %159 = vmatprep.subr.bf16.mxu0 0
    %160 = vmatpush1.bf16.msra.mxu0 %v132
    %161 = vmatprep.subr.bf16.mxu0 0
    %162 = vmatpush1.bf16.msra.mxu0 %v133
    %163 = vmatprep.subr.bf16.mxu0 0
    %164 = vmatpush1.bf16.msra.mxu0 %v134
    %165 = vmatprep.subr.bf16.mxu0 0
    %166 = vmatpush1.bf16.msra.mxu0 %v135
    %167 = vmatprep.subr.bf16.mxu0 0
    %168 = vmatpush1.bf16.msra.mxu0 %v136
    %169 = vmatprep.subr.bf16.mxu0 0
    %170 = vmatpush1.bf16.msra.mxu0 %v137
    %171 = vmatprep.subr.bf16.mxu0 0
    %172 = vmatpush1.bf16.msra.mxu0 %v138
    %173 = vmatprep.subr.bf16.mxu0 0
    %174 = vmatpush1.bf16.msra.mxu0 0
    %175 = vmatprep.subr.bf16.mxu0 0
    %176 = vmatpush1.bf16.msra.mxu0 0
    %177 = vmatprep.subr.bf16.mxu0 0
    %178 = vmatpush1.bf16.msra.mxu0 0
    %179 = vmatprep.subr.bf16.mxu0 0
    %180 = vmatpush1.bf16.msra.mxu0 0
    %181 = vmatprep.subr.bf16.mxu0 0
    %182 = vmatpush1.bf16.msra.mxu0 0
    %183 = vmatprep.subr.bf16.mxu0 0
    %184 = vmatpush1.bf16.msra.mxu0 0
    %185 = vmatprep.subr.bf16.mxu0 0
    %186 = vmatpush1.bf16.msra.mxu0 0
    %187 = vmatprep.mubr.bf16.mxu0 %v150
    %188 = vmatmul.mubr.bf16.gmra.mrb[0].mxu0 %v88
    %v189 = vpop.f32.mrb[0].mxu0
    %v190 = vadd.f32 %v59, %v189
    %v191 = vpop.f32.mrb[0].mxu0
    %v192 = vpop.f32.mrb[0].mxu0
    %v193 = vadd.f32 %v64, %v192
    %v194 = vpop.f32.mrb[0].mxu0
    %195 = vmatprep.mubr.bf16.mxu0 %v153
    %196 = vmatmul.mubr.bf16.gmra.mrb[0].mxu0 %v90
    %v197 = vpop.f32.mrb[0].mxu0
    %v198 = vadd.f32 %v69, %v197
    %v199 = vpop.f32.mrb[0].mxu0
    %v200 = vpop.f32.mrb[0].mxu0
    %v201 = vadd.f32 %v74, %v200
    %v202 = vpop.f32.mrb[0].mxu0
    %203 = vdwg.mxu0
    %204 = vst [vmem:[#allocation5] sm:$0xff] %v190
    %205 = vst [vmem:[#allocation5 + $0x8] sm:$0xff] %v193
    %206 = vst [vmem:[#allocation5 + $0x10] sm:$0xff] %v198
    %207 = vst [vmem:[#allocation5 + $0x18] sm:$0xff] %v201
    // Predicated region
    $region18: #{tpu_custom_call.1} parent=1 // pred_check
      _
    $region19: #{tpu_custom_call.1} parent=1 // pred_check_branch
      %209 = sbr.rel (0) target = $region21
    $region20: #{tpu_custom_call.1} parent=1 // pred_region
      %s211 = ssub.s32 512, 512
      %212 = vsyncadd [#allocation4], %s211
      %s213 = sshll.u32 [#allocation5], 4
      %s214 = int_to_ptr.vmem [resolvable:$true] %s213
      %219 = dma.vmem_to_hbm [thread:$0]  %s214, 512, %s3, [#allocation4], 128, 128, 8
    $region21: #{tpu_custom_call.1} parent=1 // pred_fallthru
      _
    // Predicated region
    $region22: #{tpu_custom_call.1} parent=1 // pred_check
      _
    $region23: #{tpu_custom_call.1} parent=1 // pred_check_branch
      %221 = sbr.rel (0) target = $region25
    $region24: #{tpu_custom_call.1} parent=1 // pred_region
      %222 = dma.done [#allocation4], 512
    $region25: #{tpu_custom_call.1} parent=1 // pred_fallthru
      _
    %223 = vsyncpa [#allocation3], 1
    %224 = vsyncpa [#allocation4], 1

</llo_original>
